<compile_context>
chip_gen: v7x
topology: tpu7x:2x2x1
jax: 0.10.0
libtpu: 0.0.40
codegen_flags: <defaults>
</compile_context>

<pallas_src>
import math

import jax
import jax.numpy as jnp
from jax.experimental import pallas as pl
from jax.experimental.pallas import tpu as pltpu

_LANES = 128
_SUBLANES = 8
_VREG_ELEMS = _LANES * _SUBLANES  # 1024 elements per full f32 vreg tile


def _identity_kernel(x_ref, o_ref):
    # Elementwise copy of the current VMEM tile.
    o_ref[...] = x_ref[...]


def _pick_tile(extent: int, target: int, unit: int) -> int:
    """Choose a tile length along one axis.

    extent: number of units to cover (rows for the 2D path, elements for 1D).
    target: preferred tile length (~4 MiB worth).
    unit:   alignment quantum (8 rows / 1024 elements) for full-vreg tiles.
    """
    if extent <= unit:
        return extent  # single full-extent block (block == full array dim)
    if extent >= 2 * target:
        tile = target  # large array: target-sized blocks, grid >= 2
    elif extent > 4 * unit:
        tile = pl.cdiv(extent, 4)  # medium: ~4 steps so both v7x TCs get work
    else:
        tile = extent  # small: one block
    if tile < extent:
        # Round down to a full-vreg multiple; cdiv grid masks the last block.
        tile = max(unit, (tile // unit) * unit)
    return min(tile, extent)


def _identity_copy_pallas(x: jax.Array, *, target_block_bytes: int = 4 * 1024 * 1024) -> jax.Array:
    """Materialized identity copy implemented as a Pallas TPU kernel."""
    orig_shape = x.shape
    dtype = x.dtype
    total = math.prod(orig_shape) if orig_shape else 1
    if total == 0:
        return x

    itemsize = jnp.dtype(dtype).itemsize
    flat = x.reshape(-1)

    if total % _LANES == 0:
        # Lane-dense 2D path: (rows, 128). Unmasked full-width stores on every
        # block except (possibly) the final ragged row-block.
        rows = total // _LANES
        target_rows = max(_SUBLANES, target_block_bytes // (_LANES * itemsize))
        tile_rows = _pick_tile(rows, target_rows, _SUBLANES)

        operand = flat.reshape(rows, _LANES)
        grid = (pl.cdiv(rows, tile_rows),)
        in_spec = pl.BlockSpec((tile_rows, _LANES), lambda i: (i, 0))
        out_spec = pl.BlockSpec((tile_rows, _LANES), lambda i: (i, 0))
        out_shape = jax.ShapeDtypeStruct((rows, _LANES), dtype)
        block_bytes = tile_rows * _LANES * itemsize
    else:
        # Ragged flat size: 1D blocks (multiples of 1024 elems), cdiv grid.
        # No padding / slicing passes; only the final block gets a masked store.
        target_elems = max(
            _VREG_ELEMS,
            ((target_block_bytes // itemsize) // _VREG_ELEMS) * _VREG_ELEMS,
        )
        tile_elems = _pick_tile(total, target_elems, _VREG_ELEMS)

        operand = flat
        grid = (pl.cdiv(total, tile_elems),)
        in_spec = pl.BlockSpec((tile_elems,), lambda i: (i,))
        out_spec = pl.BlockSpec((tile_elems,), lambda i: (i,))
        out_shape = jax.ShapeDtypeStruct((total,), dtype)
        block_bytes = tile_elems * itemsize

    # Only 4 buffers are live (in + out, double-buffered); ~5x block_bytes plus
    # headroom is enough, and the 40 MiB cap keeps us well inside v7x's 64 MiB.
    vmem_limit = int(5 * block_bytes + (1 << 20))
    vmem_limit = max(4 * 1024 * 1024, min(vmem_limit, 40 * 1024 * 1024))

    out = pl.pallas_call(
        _identity_kernel,
        out_shape=out_shape,
        grid_spec=pltpu.PrefetchScalarGridSpec(
            num_scalar_prefetch=0,
            grid=grid,
            in_specs=[in_spec],
            out_specs=out_spec,
        ),
        compiler_params=pltpu.CompilerParams(
            dimension_semantics=("parallel",),
            vmem_limit_bytes=vmem_limit,
        ),
        cost_estimate=pl.CostEstimate(
            flops=0,
            transcendentals=0,
            bytes_accessed=2 * total * itemsize,
        ),
    )(operand)

    return out.reshape(orig_shape)


def identity_pallas(x: jax.Array, *, materialize: bool = False) -> jax.Array:
    """Identity forward pass.

    Default (materialize=False): returns the input unchanged -- the optimal
    lowering for nn.Identity (zero HBM traffic, zero launch overhead).

    materialize=True: runs the Pallas copy kernel and returns a *fresh* output
    buffer (no input/output aliasing).
    """
    if not materialize:
        return x
    return _identity_copy_pallas(x)


if __name__ == "__main__":
    key = jax.random.PRNGKey(0)
    # Small NCHW input consistent with a detection-head feature map.
    x = jax.random.normal(key, (2, 4, 16, 16), dtype=jnp.float32)

    # Fast path: true identity (no kernel, no HBM round-trip).
    y_fast = identity_pallas(x)
    jax.block_until_ready(y_fast)
    assert y_fast.shape == x.shape and y_fast.dtype == x.dtype
    assert bool(jnp.array_equal(y_fast, x))

    # Materialized path: lane-dense 2D copy, single block.
    y = identity_pallas(x, materialize=True)
    jax.block_until_ready(y)
    assert y.shape == x.shape and y.dtype == x.dtype
    assert bool(jnp.array_equal(y, x))

    # 2D lane-dense path with a ragged (masked) final row-block: 50 rows of 128.
    x_rows = jax.random.normal(jax.random.PRNGKey(0), (2, 4, 50, 16), dtype=jnp.float32)
    y_rows = identity_pallas(x_rows, materialize=True)
    jax.block_until_ready(y_rows)
    assert y_rows.shape == x_rows.shape and y_rows.dtype == x_rows.dtype
    assert bool(jnp.array_equal(y_rows, x_rows))

    # Fully ragged flat size (5005 elems): 1D path, masked final block, no padding.
    x_odd = jax.random.normal(jax.random.PRNGKey(0), (5, 7, 11, 13), dtype=jnp.float32)
    y_odd = identity_pallas(x_odd, materialize=True)
    jax.block_until_ready(y_odd)
    assert y_odd.shape == x_odd.shape and y_odd.dtype == x_odd.dtype
    assert bool(jnp.array_equal(y_odd, x_odd))

    # Tiny ragged size (< one vreg): single full-extent 1D block.
    x_tiny = jax.random.normal(jax.random.PRNGKey(0), (3, 5, 7), dtype=jnp.float32)
    y_tiny = identity_pallas(x_tiny, materialize=True)
    jax.block_until_ready(y_tiny)
    assert y_tiny.shape == x_tiny.shape and y_tiny.dtype == x_tiny.dtype
    assert bool(jnp.array_equal(y_tiny, x_tiny))

    print("KERNEL_OK")
</pallas_src>

<mosaic_0001>
module attributes {stable_mosaic.version = 11 : i64} {
  func.func @_identity_kernel(%arg0: i32, %arg1: memref<16x128xf32, #tpu.memory_space<vmem>>, %arg2: memref<16x128xf32, #tpu.memory_space<vmem>>) attributes {dimension_semantics = [#tpu.dimension_semantics<parallel>], iteration_bounds = array<i64: 1>, scalar_prefetch = 0 : i64, scratch_operands = 0 : i64, tpu.core_type = #tpu.core_type<tc>, window_params = [{transform_indices = @transform_0, window_bounds = array<i64: 16, 128>}, {transform_indices = @transform_1, window_bounds = array<i64: 16, 128>}]} {
    %c0 = arith.constant 0 : index
    %c0_0 = arith.constant 0 : index
    %0 = vector.load %arg1[%c0, %c0_0] : memref<16x128xf32, #tpu.memory_space<vmem>>, vector<16x128xf32>
    %c0_1 = arith.constant 0 : index
    %c0_2 = arith.constant 0 : index
    %1 = vector.load %arg2[%c0_1, %c0_2] : memref<16x128xf32, #tpu.memory_space<vmem>>, vector<16x128xf32>
    tpu.vector_store %arg2[%c0_1, %c0_2], %0 {strides = array<i32>} : memref<16x128xf32, #tpu.memory_space<vmem>>, vector<16x128xf32>,
    return
  }
  func.func @transform_0(%arg0: i32) -> (i32, i32) {
    %c0_i32 = arith.constant 0 : i32
    %c0_i32_0 = arith.constant 0 : i32
    return %arg0, %c0_i32 : i32, i32
  }
  func.func @transform_1(%arg0: i32) -> (i32, i32) {
    %c0_i32 = arith.constant 0 : i32
    %c0_i32_0 = arith.constant 0 : i32
    return %arg0, %c0_i32 : i32, i32
  }
}

</mosaic_0001>

<llo_original>
// kernel: tpu_custom_call.1
$region0: #{tpu_custom_call.1}
  #allocation0 [shape = 'u32[]', space=smem, size = 0x4, offset = 0x4, fixed_abs, tag = 'smem constant byte address 0x4 - core index']
  #allocation1 [shape = 'u32[144,128]{1,0:T(1,128)}', space=vmem, size = 0x12000, scoped, tag = 'internal scratch']
  %s0 = inlined_call_operand.hbm [shape: f32[16,128], index: 0, kind: input, shape index: {}]
  %s1 = inlined_call_operand.hbm [shape: f32[16,128], index: 1, kind: output, shape index: {}]
  %s2 = sld [smem:[#allocation0]]
  $region18: #{tpu_custom_call.1} parent=0
    _
  %s4 = ssub.s32 1, %s2
  %s5 = scalar_select 0, %s4, %s2
  $region1: #{tpu_custom_call.1} parent=0
    #allocation2 [shape = 'u8[8192]{0}', space=vmem, size = 0x2000, scoped, tag = 'input window, operand 0, single buffered']
    #allocation3 [shape = 's32[1]{0}', space=sflag, size = 0x4, scoped, tag = 'scoped memory for tpu_custom_call.1']
    #allocation4 [shape = 's32[1]{0}', space=sflag, size = 0x4, scoped, tag = 'scoped memory for tpu_custom_call.1']
    #allocation5 [shape = 'u8[8192]{0}', space=vmem, size = 0x2000, scoped, tag = 'output window, operand 0, single buffered']
    %6 = vsyncpa [#allocation3], 0
    %7 = vsyncpa [#allocation4], 0
    // Predicated region
    $region2: #{tpu_custom_call.1} parent=1 // pred_check
      _
    $region3: #{tpu_custom_call.1} parent=1 // pred_check_branch
      %9 = sbr.rel (0) target = $region5
    $region4: #{tpu_custom_call.1} parent=1 // pred_region
      %s11 = ssub.s32 256, 256
      %12 = vsyncadd [#allocation3], %s11
      %s13 = sshll.u32 [#allocation2], 4
      %s14 = int_to_ptr.vmem [resolvable:$true] %s13
      %19 = dma.hbm_to_vmem [thread:$0]  %s0, 256, %s14, [#allocation3], 128, 128, 8
    $region5: #{tpu_custom_call.1} parent=1 // pred_fallthru
      _
    // Predicated region
    $region6: #{tpu_custom_call.1} parent=1 // pred_check
      _
    $region7: #{tpu_custom_call.1} parent=1 // pred_check_branch
      %21 = sbr.rel (0) target = $region9
    $region8: #{tpu_custom_call.1} parent=1 // pred_region
      %22 = dma.done [#allocation3], 256
    $region9: #{tpu_custom_call.1} parent=1 // pred_fallthru
      _
    %v23 = vld [vmem:[#allocation2] sm:$0xff]
    %v24 = vld [vmem:[#allocation2 + $0x8] sm:$0xff]
    %25 = vst [vmem:[#allocation5] sm:$0xff] %v23
    %26 = vst [vmem:[#allocation5 + $0x8] sm:$0xff] %v24
    // Predicated region
    $region10: #{tpu_custom_call.1} parent=1 // pred_check
      _
    $region11: #{tpu_custom_call.1} parent=1 // pred_check_branch
      %28 = sbr.rel (0) target = $region13
    $region12: #{tpu_custom_call.1} parent=1 // pred_region
      %s30 = ssub.s32 256, 256
      %31 = vsyncadd [#allocation4], %s30
      %s32 = sshll.u32 [#allocation5], 4
      %s33 = int_to_ptr.vmem [resolvable:$true] %s32
      %38 = dma.vmem_to_hbm [thread:$0]  %s33, 256, %s1, [#allocation4], 128, 128, 8
    $region13: #{tpu_custom_call.1} parent=1 // pred_fallthru
      _
    // Predicated region
    $region14: #{tpu_custom_call.1} parent=1 // pred_check
      _
    $region15: #{tpu_custom_call.1} parent=1 // pred_check_branch
      %40 = sbr.rel (0) target = $region17
    $region16: #{tpu_custom_call.1} parent=1 // pred_region
      %41 = dma.done [#allocation4], 256
    $region17: #{tpu_custom_call.1} parent=1 // pred_fallthru
      _
    %42 = vsyncpa [#allocation3], 1
    %43 = vsyncpa [#allocation4], 1

</llo_original>
